<compile_context>
chip_gen: v5e
topology: v5e:2x2
jax: 0.10.0
libtpu: 0.0.40
codegen_flags: <defaults>
</compile_context>

<pallas_src>
import functools

import jax
import jax.numpy as jnp
from jax.experimental import pallas as pl
from jax.experimental.pallas import tpu as pltpu


def _round_up(v, m):
    return -(-v // m) * m


def _vmem_capacity_bytes():
    """Per-core VMEM capacity; conservative (v7x-sized) fallback."""
    try:
        info = pltpu.get_tpu_info()
        cap = getattr(info, "vmem_capacity_bytes", None)
        if cap and int(cap) >= (32 << 20):
            return int(cap)
    except Exception:
        pass
    return 64 << 20


def _gated_kernel(x_ref, h_ref, wx_ref, wh_ref, bx_ref, wfh_ref, be_ref,
                  out_ref, *, dim1, dim2, dim1p, dim2p):
    # x_ref: (dim1, TM), h_ref: (dim2, TM) — channels on sublanes, pixels on lanes.
    x = x_ref[...]
    h = h_ref[...]
    k = dim2p + dim1p  # rows of the stacked [r | z] block (sublane-aligned)

    # Two stacked 1x1 convs on the MXU with f32 accumulation (3 matmuls total
    # per step instead of 7).
    sx = jnp.dot(wx_ref[...], x, preferred_element_type=jnp.float32) + bx_ref[...]
    sh = jnp.dot(wh_ref[...], h, preferred_element_type=jnp.float32)

    # r / z gates: one EUP sigmoid over the contiguous [r | z] block.
    rz = jax.nn.sigmoid(sx[:k] + sh[:k])
    r = rz[:dim2]                      # (dim2, TM)
    z = rz[dim2p:dim2p + dim1]         # (dim1, TM), aligned start

    # h_hat = tanh(Wf_x @ x + bf + Wf_h @ (h * r))
    hr = (h.astype(jnp.float32) * r).astype(h.dtype)
    h_hat = jnp.tanh(sx[k:k + dim1]
                     + jnp.dot(wfh_ref[...], hr, preferred_element_type=jnp.float32))

    # e = extract(h) = W_e @ h + be
    e = sh[k:k + dim1] + be_ref[...]

    # out = (1 - z) * e + z * h_hat == e + z * (h_hat - e)   (one fewer VPU mul)
    out_ref[...] = (e + z * (h_hat - e)).astype(out_ref.dtype)


def gated_module_pallas(x, h, params, *, compute_dtype=None):
    """x: (N, dim1, H, W), h: (N, dim2, H, W) -> (N, dim1, H, W)."""
    N, dim1, H, W = x.shape
    dim2 = h.shape[1]
    P = H * W
    out_dtype = x.dtype
    cdt = jnp.dtype(compute_dtype) if compute_dtype is not None else jnp.dtype(x.dtype)

    # Free reshapes — no transpose, no extra HBM traffic.
    x3 = x.reshape(N, dim1, P).astype(cdt)
    h3 = h.reshape(N, dim2, P).astype(cdt)

    # ---- Wrapper-side weight stacking (no in-kernel concat, 3 matmuls). ------
    wr, br = params["wr"], params["br"]
    wz, bz = params["wz"], params["bz"]
    wf, bf = params["wf"], params["bf"]
    we, be = params["we"], params["be"]
    dim1p = _round_up(dim1, 8)
    dim2p = _round_up(dim2, 8)

    def pad_rows(a, rows):
        return jnp.pad(a, ((0, rows - a.shape[0]),) + ((0, 0),) * (a.ndim - 1))

    # x-side stack rows: [r-block | z-block | f-block], each padded to 8-row multiples.
    wx_stack = jnp.concatenate([pad_rows(wr[:, :dim1], dim2p),
                                pad_rows(wz[:, :dim1], dim1p),
                                pad_rows(wf[:, :dim1], dim1p)], axis=0).astype(cdt)
    # h-side stack rows: [r-block | z-block | e-block].
    wh_stack = jnp.concatenate([pad_rows(wr[:, dim1:], dim2p),
                                pad_rows(wz[:, dim1:], dim1p),
                                pad_rows(we,           dim1p)], axis=0).astype(cdt)
    wfh = wf[:, dim1:].astype(cdt)                                    # (dim1, dim2)
    bx_stack = jnp.concatenate([pad_rows(br, dim2p),
                                pad_rows(bz, dim1p),
                                pad_rows(bf, dim1p)]).reshape(-1, 1).astype(jnp.float32)
    be_c = be.reshape(dim1, 1).astype(jnp.float32)

    # ---- Tile-size / VMEM heuristics (generation-aware). ---------------------
    elem_c = cdt.itemsize
    elem_o = jnp.dtype(out_dtype).itemsize
    per_pixel = (dim1 + dim2) * elem_c + dim1 * elem_o   # x + h + out bytes / pixel
    p_pad = pl.cdiv(P, 128) * 128

    vmem_cap = _vmem_capacity_bytes()
    is_small_vmem = vmem_cap <= (64 << 20)               # v7x: 64 MiB / TC
    # Target ~4 MiB of HBM traffic per grid step (>=85% of roofline in the
    # measured tile sweep), bounded by a generation-aware double-buffer budget.
    target_step_bytes = 4 << 20
    tile_budget = (10 << 20) if is_small_vmem else (28 << 20)
    tile_m = (target_step_bytes // per_pixel) // 128 * 128
    tile_m = min(tile_m, (tile_budget // (2 * per_pixel)) // 128 * 128)
    tile_m = max(128, min(tile_m, p_pad))

    # Keep >= 2 pixel tiles when batch == 1 so both v7x TensorCores get work
    # (costs only one extra ~0.35us grid step on single-core chips).
    if N < 2 and P > 128:
        tile_m = min(tile_m, _round_up(-(-P // 2), 128))

    grid = (N, pl.cdiv(P, tile_m))

    weights = (wx_stack, wh_stack, wfh, bx_stack, be_c)
    weight_bytes = sum(int(a.size) * jnp.dtype(a.dtype).itemsize for a in weights)
    s_rows = dim2p + 2 * dim1p
    inter_bytes = (3 * s_rows + 4 * max(dim1p, dim2p)) * tile_m * 4   # f32 temps
    vmem_est = (2 * tile_m * per_pixel        # double-buffered x/h/out tiles
                + 2 * weight_bytes            # weights (pipeliner keeps 2 copies)
                + inter_bytes                 # Sx/Sh/r/z/h_hat/e live values
                + (4 << 20))                  # Mosaic internal scratch headroom
    vmem_cap_usable = int(0.75 * vmem_cap)    # ~48 MiB on v7x, ~96 MiB on v5e/v6e

    # TODO(synk): add a c_in-tiled accumulator grid axis (init/finalize via
    # pl.when) so very large dim1/dim2 fit v7x's 64 MiB VMEM; until then fail
    # loudly instead of silently spilling.
    if 2 * weight_bytes + (12 << 20) > vmem_cap_usable:
        raise NotImplementedError(
            f"Gated_Module weights ({2 * weight_bytes / 2 ** 20:.1f} MiB double-buffered) "
            f"exceed this TPU's usable VMEM budget ({vmem_cap_usable / 2 ** 20:.1f} MiB); "
            "channel (c_in) tiling is required for dim1/dim2 this large.")

    vmem_limit = int(min(vmem_cap_usable, max(32 << 20, vmem_est)))

    kern = functools.partial(_gated_kernel, dim1=dim1, dim2=dim2,
                             dim1p=dim1p, dim2p=dim2p)

    def pix_spec(c):
        # (batch squeezed, channels, pixel tile); pixels are the fast (lane) axis.
        return pl.BlockSpec((None, c, tile_m), lambda b, j: (b, 0, j))

    def const_spec(a):
        # Full-array (grid-invariant) weight block.
        return pl.BlockSpec(a.shape, lambda b, j: (0, 0))

    out3 = pl.pallas_call(
        kern,
        out_shape=jax.ShapeDtypeStruct((N, dim1, P), out_dtype),
        grid=grid,
        in_specs=[
            pix_spec(dim1),                 # x tile
            pix_spec(dim2),                 # h tile
            const_spec(wx_stack), const_spec(wh_stack), const_spec(bx_stack),
            const_spec(wfh), const_spec(be_c),
        ],
        out_specs=pix_spec(dim1),
        compiler_params=pltpu.CompilerParams(
            dimension_semantics=("parallel", "parallel"),
            vmem_limit_bytes=vmem_limit),
    )(x3, h3, wx_stack, wh_stack, bx_stack, wfh, be_c)

    return out3.reshape(N, dim1, H, W)


def init_params(key, dim1, dim2, dtype=jnp.float32):
    """Synthetic params in PyTorch Conv2d layout: weight (out, in), bias (out,)."""
    cin = dim1 + dim2
    ks = jax.random.split(key, 8)
    w = lambda k, o, i: jax.random.normal(k, (o, i), dtype) * 0.1
    b = lambda k, o: jax.random.normal(k, (o,), dtype) * 0.1
    return {
        "wr": w(ks[0], dim2, cin), "br": b(ks[1], dim2),
        "wz": w(ks[2], dim1, cin), "bz": b(ks[3], dim1),
        "wf": w(ks[4], dim1, cin), "bf": b(ks[5], dim1),
        "we": w(ks[6], dim1, dim2), "be": b(ks[7], dim1),
    }


def gated_module_ref(x, h, p):
    """Pure-JAX NCHW reference mirroring the PyTorch forward."""
    def conv1x1(w, b, inp):
        return jnp.einsum("oc,nchw->nohw", w, inp) + b[None, :, None, None]
    xh = jnp.concatenate([x, h], axis=1)
    r = jax.nn.sigmoid(conv1x1(p["wr"], p["br"], xh))
    z = jax.nn.sigmoid(conv1x1(p["wz"], p["bz"], xh))
    h_hat = jnp.tanh(conv1x1(p["wf"], p["bf"], jnp.concatenate([x, h * r], axis=1)))
    out = (1.0 - z) * conv1x1(p["we"], p["be"], h) + z * h_hat
    return out


if __name__ == "__main__":
    key = jax.random.PRNGKey(0)
    k_x, k_h, k_p = jax.random.split(key, 3)

    N, dim1, dim2, Hs, Ws = 2, 4, 4, 16, 16
    x = jax.random.normal(k_x, (N, dim1, Hs, Ws), jnp.float32)
    h = jax.random.normal(k_h, (N, dim2, Hs, Ws), jnp.float32)
    params = init_params(k_p, dim1, dim2)

    out = gated_module_pallas(x, h, params)
    jax.block_until_ready(out)

    ref = gated_module_ref(x, h, params)
    assert out.shape == (N, dim1, Hs, Ws)
    err = float(jnp.max(jnp.abs(out - ref)))
    assert jnp.allclose(out, ref, atol=1e-5, rtol=1e-5), err

    print("KERNEL_OK")
</pallas_src>

<mosaic_0001>
module attributes {stable_mosaic.version = 11 : i64} {
  func.func @_gated_kernel(%arg0: i32, %arg1: i32, %arg2: memref<1x4x256xf32, #tpu.memory_space<vmem>>, %arg3: memref<1x4x256xf32, #tpu.memory_space<vmem>>, %arg4: memref<24x4xf32, #tpu.memory_space<vmem>>, %arg5: memref<24x4xf32, #tpu.memory_space<vmem>>, %arg6: memref<24x1xf32, #tpu.memory_space<vmem>>, %arg7: memref<4x4xf32, #tpu.memory_space<vmem>>, %arg8: memref<4x1xf32, #tpu.memory_space<vmem>>, %arg9: memref<1x4x256xf32, #tpu.memory_space<vmem>>) attributes {dimension_semantics = [#tpu.dimension_semantics<parallel>, #tpu.dimension_semantics<parallel>], iteration_bounds = array<i64: 2, 1>, scalar_prefetch = 0 : i64, scratch_operands = 0 : i64, tpu.core_type = #tpu.core_type<tc>, window_params = [{transform_indices = @transform_0, window_bounds = array<i64: 1, 4, 256>}, {transform_indices = @transform_1, window_bounds = array<i64: 1, 4, 256>}, {pipeline_mode = #tpu.pipeline_mode<synchronous>, transform_indices = @transform_2, window_bounds = array<i64: 24, 4>}, {pipeline_mode = #tpu.pipeline_mode<synchronous>, transform_indices = @transform_3, window_bounds = array<i64: 24, 4>}, {pipeline_mode = #tpu.pipeline_mode<synchronous>, transform_indices = @transform_4, window_bounds = array<i64: 24, 1>}, {pipeline_mode = #tpu.pipeline_mode<synchronous>, transform_indices = @transform_5, window_bounds = array<i64: 4, 4>}, {pipeline_mode = #tpu.pipeline_mode<synchronous>, transform_indices = @transform_6, window_bounds = array<i64: 4, 1>}, {transform_indices = @transform_7, window_bounds = array<i64: 1, 4, 256>}]} {
    %c0 = arith.constant 0 : index
    %c0_0 = arith.constant 0 : index
    %c0_1 = arith.constant 0 : index
    %0 = vector.load %arg2[%c0, %c0_0, %c0_1] : memref<1x4x256xf32, #tpu.memory_space<vmem>>, vector<1x4x256xf32>
    %1 = vector.shape_cast %0 : vector<1x4x256xf32> to vector<4x256xf32>
    %c0_2 = arith.constant 0 : index
    %c0_3 = arith.constant 0 : index
    %c0_4 = arith.constant 0 : index
    %2 = vector.load %arg3[%c0_2, %c0_3, %c0_4] : memref<1x4x256xf32, #tpu.memory_space<vmem>>, vector<1x4x256xf32>
    %3 = vector.shape_cast %2 : vector<1x4x256xf32> to vector<4x256xf32>
    %c0_5 = arith.constant 0 : index
    %c0_6 = arith.constant 0 : index
    %4 = vector.load %arg4[%c0_5, %c0_6] : memref<24x4xf32, #tpu.memory_space<vmem>>, vector<24x4xf32>
    %cst = arith.constant dense<0.000000e+00> : vector<24x256xf32>
    %5 = tpu.matmul %4, %1, %cst {dimension_numbers = #tpu.dot_dimension_numbers<[1], [0], [0], [1], [0, 0, 1, 1], [], []>} : vector<24x4xf32>, vector<4x256xf32>, vector<24x256xf32> -> vector<24x256xf32>
    %c0_7 = arith.constant 0 : index
    %c0_8 = arith.constant 0 : index
    %6 = vector.load %arg6[%c0_7, %c0_8] : memref<24x1xf32, #tpu.memory_space<vmem>>, vector<24x1xf32>
    %7 = vector.broadcast %6 : vector<24x1xf32> to vector<24x256xf32>
    %8 = arith.addf %5, %7 : vector<24x256xf32>
    %c0_9 = arith.constant 0 : index
    %c0_10 = arith.constant 0 : index
    %9 = vector.load %arg5[%c0_9, %c0_10] : memref<24x4xf32, #tpu.memory_space<vmem>>, vector<24x4xf32>
    %cst_11 = arith.constant dense<0.000000e+00> : vector<24x256xf32>
    %10 = tpu.matmul %9, %3, %cst_11 {dimension_numbers = #tpu.dot_dimension_numbers<[1], [0], [0], [1], [0, 0, 1, 1], [], []>} : vector<24x4xf32>, vector<4x256xf32>, vector<24x256xf32> -> vector<24x256xf32>
    %11 = vector.extract_strided_slice %8 {offsets = [0, 0], sizes = [16, 256], strides = [1, 1]} : vector<24x256xf32> to vector<16x256xf32>
    %12 = vector.extract_strided_slice %10 {offsets = [0, 0], sizes = [16, 256], strides = [1, 1]} : vector<24x256xf32> to vector<16x256xf32>
    %13 = arith.addf %11, %12 : vector<16x256xf32>
    %14 = arith.negf %13 : vector<16x256xf32>
    %15 = math.exp %14 : vector<16x256xf32>
    %cst_12 = arith.constant 1.000000e+00 : f32
    %16 = vector.broadcast %cst_12 : f32 to vector<16x256xf32>
    %17 = arith.addf %16, %15 : vector<16x256xf32>
    %18 = arith.divf %16, %17 : vector<16x256xf32>
    %19 = vector.extract_strided_slice %18 {offsets = [0, 0], sizes = [4, 256], strides = [1, 1]} : vector<16x256xf32> to vector<4x256xf32>
    %20 = vector.extract_strided_slice %18 {offsets = [8, 0], sizes = [4, 256], strides = [1, 1]} : vector<16x256xf32> to vector<4x256xf32>
    %21 = arith.mulf %3, %19 : vector<4x256xf32>
    %22 = vector.extract_strided_slice %8 {offsets = [16, 0], sizes = [4, 256], strides = [1, 1]} : vector<24x256xf32> to vector<4x256xf32>
    %c0_13 = arith.constant 0 : index
    %c0_14 = arith.constant 0 : index
    %23 = vector.load %arg7[%c0_13, %c0_14] : memref<4x4xf32, #tpu.memory_space<vmem>>, vector<4x4xf32>
    %cst_15 = arith.constant dense<0.000000e+00> : vector<4x256xf32>
    %24 = tpu.matmul %23, %21, %cst_15 {dimension_numbers = #tpu.dot_dimension_numbers<[1], [0], [0], [1], [0, 0, 1, 1], [], []>} : vector<4x4xf32>, vector<4x256xf32>, vector<4x256xf32> -> vector<4x256xf32>
    %25 = arith.addf %22, %24 : vector<4x256xf32>
    %26 = math.tanh %25 : vector<4x256xf32>
    %27 = vector.extract_strided_slice %10 {offsets = [16, 0], sizes = [4, 256], strides = [1, 1]} : vector<24x256xf32> to vector<4x256xf32>
    %c0_16 = arith.constant 0 : index
    %c0_17 = arith.constant 0 : index
    %28 = vector.load %arg8[%c0_16, %c0_17] : memref<4x1xf32, #tpu.memory_space<vmem>>, vector<4x1xf32>
    %29 = vector.broadcast %28 : vector<4x1xf32> to vector<4x256xf32>
    %30 = arith.addf %27, %29 : vector<4x256xf32>
    %31 = arith.subf %26, %30 : vector<4x256xf32>
    %32 = arith.mulf %20, %31 : vector<4x256xf32>
    %33 = arith.addf %30, %32 : vector<4x256xf32>
    %c0_18 = arith.constant 0 : index
    %c0_19 = arith.constant 0 : index
    %c0_20 = arith.constant 0 : index
    %34 = vector.load %arg9[%c0_18, %c0_19, %c0_20] : memref<1x4x256xf32, #tpu.memory_space<vmem>>, vector<1x4x256xf32>
    %35 = vector.shape_cast %34 : vector<1x4x256xf32> to vector<4x256xf32>
    %36 = vector.shape_cast %33 : vector<4x256xf32> to vector<1x4x256xf32>
    tpu.vector_store %arg9[%c0_18, %c0_19, %c0_20], %36 {strides = array<i32>} : memref<1x4x256xf32, #tpu.memory_space<vmem>>, vector<1x4x256xf32>,
    return
  }
  func.func @transform_0(%arg0: i32, %arg1: i32) -> (i32, i32, i32) {
    %c0_i32 = arith.constant 0 : i32
    %c0_i32_0 = arith.constant 0 : i32
    return %arg0, %c0_i32, %arg1 : i32, i32, i32
  }
  func.func @transform_1(%arg0: i32, %arg1: i32) -> (i32, i32, i32) {
    %c0_i32 = arith.constant 0 : i32
    %c0_i32_0 = arith.constant 0 : i32
    return %arg0, %c0_i32, %arg1 : i32, i32, i32
  }
  func.func @transform_2(%arg0: i32, %arg1: i32) -> (i32, i32) {
    %c0_i32 = arith.constant 0 : i32
    %c0_i32_0 = arith.constant 0 : i32
    %c0_i32_1 = arith.constant 0 : i32
    return %c0_i32, %c0_i32_0 : i32, i32
  }
  func.func @transform_3(%arg0: i32, %arg1: i32) -> (i32, i32) {
    %c0_i32 = arith.constant 0 : i32
    %c0_i32_0 = arith.constant 0 : i32
    %c0_i32_1 = arith.constant 0 : i32
    return %c0_i32, %c0_i32_0 : i32, i32
  }
  func.func @transform_4(%arg0: i32, %arg1: i32) -> (i32, i32) {
    %c0_i32 = arith.constant 0 : i32
    %c0_i32_0 = arith.constant 0 : i32
    %c0_i32_1 = arith.constant 0 : i32
    return %c0_i32, %c0_i32_0 : i32, i32
  }
  func.func @transform_5(%arg0: i32, %arg1: i32) -> (i32, i32) {
    %c0_i32 = arith.constant 0 : i32
    %c0_i32_0 = arith.constant 0 : i32
    %c0_i32_1 = arith.constant 0 : i32
    return %c0_i32, %c0_i32_0 : i32, i32
  }
  func.func @transform_6(%arg0: i32, %arg1: i32) -> (i32, i32) {
    %c0_i32 = arith.constant 0 : i32
    %c0_i32_0 = arith.constant 0 : i32
    %c0_i32_1 = arith.constant 0 : i32
    return %c0_i32, %c0_i32_0 : i32, i32
  }
  func.func @transform_7(%arg0: i32, %arg1: i32) -> (i32, i32, i32) {
    %c0_i32 = arith.constant 0 : i32
    %c0_i32_0 = arith.constant 0 : i32
    return %arg0, %c0_i32, %arg1 : i32, i32, i32
  }
}

</mosaic_0001>

<llo_original>
// kernel: tpu_custom_call.1
$region0: #{tpu_custom_call.1}
  #allocation0 [shape = 'u32[]', space=smem, size = 0x4, offset = 0x4, fixed_abs, tag = 'smem constant byte address 0x4 - core index']
  #allocation1 [shape = 'u32[72,128]{1,0:T(1,128)}', space=vmem, size = 0x9000, scoped, tag = 'internal scratch']
  %s0 = inlined_call_operand.vmem [shape: f32[2,4,256], index: 0, kind: input, shape index: {}]
  %s1 = inlined_call_operand.vmem [shape: f32[2,4,256], index: 1, kind: input, shape index: {}]
  %s2 = inlined_call_operand.vmem [shape: f32[24,4], index: 2, kind: input, shape index: {}]
  %s3 = inlined_call_operand.vmem [shape: f32[24,4], index: 3, kind: input, shape index: {}]
  %s4 = inlined_call_operand.vmem [shape: f32[24,1], index: 4, kind: input, shape index: {}]
  %s5 = inlined_call_operand.vmem [shape: f32[4,4], index: 5, kind: input, shape index: {}]
  %s6 = inlined_call_operand.vmem [shape: f32[4,1], index: 6, kind: input, shape index: {}]
  %s7 = inlined_call_operand.hbm [shape: f32[2,4,256], index: 7, kind: output, shape index: {}]
  %s8 = sld [smem:[#allocation0]]
  $region61: #{tpu_custom_call.1} parent=0
    _
  %s10 = ssub.s32 1, %s8
  %s11 = scalar_select 0, %s10, %s8
  $region1: #{tpu_custom_call.1} parent=0
    #allocation2 [shape = 'u8[8192]{0}', space=vmem, size = 0x2000, scoped, tag = 'output window, operand 0']
    #allocation3 [shape = 's32[2]{0}', space=sflag, size = 0x8, scoped, tag = 'scoped memory for tpu_custom_call.1']
    %12 = vsyncpa [#allocation3], 0
    %s13 = scalar_lea.sflag [#allocation3], 1
    %14 = vsyncpa %s13, 0
    loop: start=0, step=1, limit=4
    $region2: #{tpu_custom_call.1} parent=1 // loop_pre_header
      _
    $region3: #{tpu_custom_call.1} parent=1 // loop_header
      %s16 = sphi 0, %s20
      %p17 = scmp.ge.s32.totalorder %s16, 4
      %s23 = sphi 0, %s35
      %s24 = sphi 0, %s31
      %s25 = sphi 0, %s23
      %s26 = sphi 0, %s24
      %s27 = sphi 0, %s25
      %s28 = sphi 0, %s26
      %s40 = sphi 0, %s42
      %s43 = sphi 0, %s40
      %s44 = sphi 0, %s43
      %s60 = sphi 0, %s44
      %s68 = sphi 0, %s70
      %s71 = sphi 0, %s68
      %s72 = sphi 0, %s71
      %s88 = sphi 0, %s72
      %s92 = sphi 0, %s92
      %s94 = sphi 0, %s92
      %s95 = sphi 0, %s94
      %s109 = sphi 0, %s95
      %s113 = sphi 0, %s113
      %s115 = sphi 0, %s113
      %s116 = sphi 0, %s115
      %s130 = sphi 0, %s116
      %s134 = sphi 0, %s134
      %s136 = sphi 0, %s134
      %s137 = sphi 0, %s136
      %s151 = sphi 0, %s137
      %s155 = sphi 0, %s155
      %s157 = sphi 0, %s155
      %s158 = sphi 0, %s157
      %s172 = sphi 0, %s158
      %s176 = sphi 0, %s176
      %s178 = sphi 0, %s176
      %s179 = sphi 0, %s178
      %s193 = sphi 0, %s179
      %s201 = sphi 0, %s203
      %s204 = sphi 0, %s201
      %s205 = sphi 0, %s204
      %s221 = sphi 0, %s205
    $region4: #{tpu_custom_call.1} parent=1 // loop_header_branch
      %19 = sbr.rel (%p17) target = $region8
    $region5: #{tpu_custom_call.1} parent=1 // loop_body
      %s21 = ssub.s32 %s16, 1
      %s22 = ssub.s32 %s16, 2
      %s29 = sadd.s32 1, %s24
      %p30 = scmp.ge.s32.totalorder %s29, 1
      %s31 = scalar_select %p30, 0, %s29
      %s32 = sadd.s32 1, %s23
      %s33 = scalar_select %p30, %s32, %s23
      %p34 = scmp.ge.s32.totalorder %s33, 2
      %s35 = scalar_select %p34, 0, %s33
      %s36 = ssub.s32 %s23, %s35
      %s37 = ssub.s32 %s24, %s31
      %s38 = sor.u32 %s36, %s37
      %p39 = scmp.eq.s32.totalorder %s38, 0
      %s41 = sadd.s32 %s40, 1
      %s42 = scalar_select %p39, %s40, %s41
      %p45 = pneg %p39
      %p46 = scmp.eq.s32.totalorder %s16, 1
      %p47 = por %p45, %p46
      %p48 = scmp.ne.s32.totalorder %s40, %s43
      %p49 = scmp.eq.s32.totalorder %s16, 0
      %p50 = por %p48, %p49
      %p51 = scmp.ne.s32.totalorder %s40, %s43
      %p52 = scmp.eq.s32.totalorder %s21, 1
      %p53 = por %p51, %p52
      %p54 = scmp.ne.s32.totalorder %s43, %s44
      %p55 = scmp.eq.s32.totalorder %s21, 0
      %p56 = por %p54, %p55
      %p57 = scmp.ne.s32.totalorder %s43, %s44
      %p58 = scmp.eq.s32.totalorder %s22, 1
      %p59 = por %p57, %p58
      %p61 = scmp.ne.s32.totalorder %s44, %s60
      %p62 = scmp.eq.s32.totalorder %s22, 0
      %p63 = por %p61, %p62
      %s64 = ssub.s32 %s23, %s35
      %s65 = ssub.s32 %s24, %s31
      %s66 = sor.u32 %s64, %s65
      %p67 = scmp.eq.s32.totalorder %s66, 0
      %s69 = sadd.s32 %s68, 1
      %s70 = scalar_select %p67, %s68, %s69
      %p73 = pneg %p67
      %p74 = scmp.eq.s32.totalorder %s16, 1
      %p75 = por %p73, %p74
      %p76 = scmp.ne.s32.totalorder %s68, %s71
      %p77 = scmp.eq.s32.totalorder %s16, 0
      %p78 = por %p76, %p77
      %p79 = scmp.ne.s32.totalorder %s68, %s71
      %p80 = scmp.eq.s32.totalorder %s21, 1
      %p81 = por %p79, %p80
      %p82 = scmp.ne.s32.totalorder %s71, %s72
      %p83 = scmp.eq.s32.totalorder %s21, 0
      %p84 = por %p82, %p83
      %p85 = scmp.ne.s32.totalorder %s71, %s72
      %p86 = scmp.eq.s32.totalorder %s22, 1
      %p87 = por %p85, %p86
      %p89 = scmp.ne.s32.totalorder %s72, %s88
      %p90 = scmp.eq.s32.totalorder %s22, 0
      %p91 = por %p89, %p90
      %s93 = sadd.s32 %s92, 1
      %p96 = scmp.eq.s32.totalorder %s16, 1
      %p97 = scmp.ne.s32.totalorder %s92, %s94
      %p98 = scmp.eq.s32.totalorder %s16, 0
      %p99 = por %p97, %p98
      %p100 = scmp.ne.s32.totalorder %s92, %s94
      %p101 = scmp.eq.s32.totalorder %s21, 1
      %p102 = por %p100, %p101
      %p103 = scmp.ne.s32.totalorder %s94, %s95
      %p104 = scmp.eq.s32.totalorder %s21, 0
      %p105 = por %p103, %p104
      %p106 = scmp.ne.s32.totalorder %s94, %s95
      %p107 = scmp.eq.s32.totalorder %s22, 1
      %p108 = por %p106, %p107
      %p110 = scmp.ne.s32.totalorder %s95, %s109
      %p111 = scmp.eq.s32.totalorder %s22, 0
      %p112 = por %p110, %p111
      %s114 = sadd.s32 %s113, 1
      %p117 = scmp.eq.s32.totalorder %s16, 1
      %p118 = scmp.ne.s32.totalorder %s113, %s115
      %p119 = scmp.eq.s32.totalorder %s16, 0
      %p120 = por %p118, %p119
      %p121 = scmp.ne.s32.totalorder %s113, %s115
      %p122 = scmp.eq.s32.totalorder %s21, 1
      %p123 = por %p121, %p122
      %p124 = scmp.ne.s32.totalorder %s115, %s116
      %p125 = scmp.eq.s32.totalorder %s21, 0
      %p126 = por %p124, %p125
      %p127 = scmp.ne.s32.totalorder %s115, %s116
      %p128 = scmp.eq.s32.totalorder %s22, 1
      %p129 = por %p127, %p128
      %p131 = scmp.ne.s32.totalorder %s116, %s130
      %p132 = scmp.eq.s32.totalorder %s22, 0
      %p133 = por %p131, %p132
      %s135 = sadd.s32 %s134, 1
      %p138 = scmp.eq.s32.totalorder %s16, 1
      %p139 = scmp.ne.s32.totalorder %s134, %s136
      %p140 = scmp.eq.s32.totalorder %s16, 0
      %p141 = por %p139, %p140
      %p142 = scmp.ne.s32.totalorder %s134, %s136
      %p143 = scmp.eq.s32.totalorder %s21, 1
      %p144 = por %p142, %p143
      %p145 = scmp.ne.s32.totalorder %s136, %s137
      %p146 = scmp.eq.s32.totalorder %s21, 0
      %p147 = por %p145, %p146
      %p148 = scmp.ne.s32.totalorder %s136, %s137
      %p149 = scmp.eq.s32.totalorder %s22, 1
      %p150 = por %p148, %p149
      %p152 = scmp.ne.s32.totalorder %s137, %s151
      %p153 = scmp.eq.s32.totalorder %s22, 0
      %p154 = por %p152, %p153
      %s156 = sadd.s32 %s155, 1
      %p159 = scmp.eq.s32.totalorder %s16, 1
      %p160 = scmp.ne.s32.totalorder %s155, %s157
      %p161 = scmp.eq.s32.totalorder %s16, 0
      %p162 = por %p160, %p161
      %p163 = scmp.ne.s32.totalorder %s155, %s157
      %p164 = scmp.eq.s32.totalorder %s21, 1
      %p165 = por %p163, %p164
      %p166 = scmp.ne.s32.totalorder %s157, %s158
      %p167 = scmp.eq.s32.totalorder %s21, 0
      %p168 = por %p166, %p167
      %p169 = scmp.ne.s32.totalorder %s157, %s158
      %p170 = scmp.eq.s32.totalorder %s22, 1
      %p171 = por %p169, %p170
      %p173 = scmp.ne.s32.totalorder %s158, %s172
      %p174 = scmp.eq.s32.totalorder %s22, 0
      %p175 = por %p173, %p174
      %s177 = sadd.s32 %s176, 1
      %p180 = scmp.eq.s32.totalorder %s16, 1
      %p181 = scmp.ne.s32.totalorder %s176, %s178
      %p182 = scmp.eq.s32.totalorder %s16, 0
      %p183 = por %p181, %p182
      %p184 = scmp.ne.s32.totalorder %s176, %s178
      %p185 = scmp.eq.s32.totalorder %s21, 1
      %p186 = por %p184, %p185
      %p187 = scmp.ne.s32.totalorder %s178, %s179
      %p188 = scmp.eq.s32.totalorder %s21, 0
      %p189 = por %p187, %p188
      %p190 = scmp.ne.s32.totalorder %s178, %s179
      %p191 = scmp.eq.s32.totalorder %s22, 1
      %p192 = por %p190, %p191
      %p194 = scmp.ne.s32.totalorder %s179, %s193
      %p195 = scmp.eq.s32.totalorder %s22, 0
      %p196 = por %p194, %p195
      %s197 = ssub.s32 %s23, %s35
      %s198 = ssub.s32 %s24, %s31
      %s199 = sor.u32 %s197, %s198
      %p200 = scmp.eq.s32.totalorder %s199, 0
      %s202 = sadd.s32 %s201, 1
      %s203 = scalar_select %p200, %s201, %s202
      %p206 = pneg %p200
      %p207 = scmp.eq.s32.totalorder %s16, 1
      %p208 = por %p206, %p207
      %p209 = scmp.ne.s32.totalorder %s201, %s204
      %p210 = scmp.eq.s32.totalorder %s16, 0
      %p211 = por %p209, %p210
      %p212 = scmp.ne.s32.totalorder %s201, %s204
      %p213 = scmp.eq.s32.totalorder %s21, 1
      %p214 = por %p212, %p213
      %p215 = scmp.ne.s32.totalorder %s204, %s205
      %p216 = scmp.eq.s32.totalorder %s21, 0
      %p217 = por %p215, %p216
      %p218 = scmp.ne.s32.totalorder %s204, %s205
      %p219 = scmp.eq.s32.totalorder %s22, 1
      %p220 = por %p218, %p219
      %p222 = scmp.ne.s32.totalorder %s205, %s221
      %p223 = scmp.eq.s32.totalorder %s22, 0
      %p224 = por %p222, %p223
      %p225 = scmp.le.s32.totalorder 1, %s16
      %p226 = scmp.lt.s32.totalorder %s16, 3
      %p227 = pnand %p225, %p226
      %p228 = pneg %p227
      // Predicated region
      $region9: #{tpu_custom_call.1} parent=5 // pred_check
        _
      $region10: #{tpu_custom_call.1} parent=5 // pred_check_branch
        %230 = sbr.rel (%p227) target = $region12
      $region11: #{tpu_custom_call.1} parent=5 // pred_region
        %s231 = ssub.s32 %s16, 1
        // Predicated region
        $region13: #{tpu_custom_call.1} parent=11 // pred_check
          %p232 = pneg %p105
        $region14: #{tpu_custom_call.1} parent=11 // pred_check_branch
          %234 = sbr.rel (%p232) target = $region16
        $region15: #{tpu_custom_call.1} parent=11 // pred_region
          _
        $region16: #{tpu_custom_call.1} parent=11 // pred_fallthru
          _
        // Predicated region
        $region17: #{tpu_custom_call.1} parent=11 // pred_check
          %p235 = pneg %p126
        $region18: #{tpu_custom_call.1} parent=11 // pred_check_branch
          %237 = sbr.rel (%p235) target = $region20
        $region19: #{tpu_custom_call.1} parent=11 // pred_region
          _
        $region20: #{tpu_custom_call.1} parent=11 // pred_fallthru
          _
        // Predicated region
        $region21: #{tpu_custom_call.1} parent=11 // pred_check
          %p238 = pneg %p147
        $region22: #{tpu_custom_call.1} parent=11 // pred_check_branch
          %240 = sbr.rel (%p238) target = $region24
        $region23: #{tpu_custom_call.1} parent=11 // pred_region
          _
        $region24: #{tpu_custom_call.1} parent=11 // pred_fallthru
          _
        // Predicated region
        $region25: #{tpu_custom_call.1} parent=11 // pred_check
          %p241 = pneg %p168
        $region26: #{tpu_custom_call.1} parent=11 // pred_check_branch
          %243 = sbr.rel (%p241) target = $region28
        $region27: #{tpu_custom_call.1} parent=11 // pred_region
          _
        $region28: #{tpu_custom_call.1} parent=11 // pred_fallthru
          _
        // Predicated region
        $region29: #{tpu_custom_call.1} parent=11 // pred_check
          %p244 = pneg %p189
        $region30: #{tpu_custom_call.1} parent=11 // pred_check_branch
          %246 = sbr.rel (%p244) target = $region32
        $region31: #{tpu_custom_call.1} parent=11 // pred_region
          _
        $region32: #{tpu_custom_call.1} parent=11 // pred_fallthru
          _
      $region12: #{tpu_custom_call.1} parent=5 // pred_fallthru
        _
      %p247 = scmp.lt.s32.totalorder %s16, 2
      // Predicated region
      $region33: #{tpu_custom_call.1} parent=5 // pred_check
        %p248 = pneg %p247
      $region34: #{tpu_custom_call.1} parent=5 // pred_check_branch
        %250 = sbr.rel (%p248) target = $region36
      $region35: #{tpu_custom_call.1} parent=5 // pred_region
        // Predicated region
        $region37: #{tpu_custom_call.1} parent=35 // pred_check
          %p251 = pneg %p50
        $region38: #{tpu_custom_call.1} parent=35 // pred_check_branch
          %253 = sbr.rel (%p251) target = $region40
        $region39: #{tpu_custom_call.1} parent=35 // pred_region
          %s254 = smul.u32 2, %s24
          %p255 = scmp.lt.s32.totalorder %s23, 1
          %s256 = scalar_select %p255, %s23, 1
          %p257 = scmp.lt.s32.totalorder %s254, 1
          %s258 = scalar_select %p257, %s254, 1
          %s259 = smul.addr %s256, 2
          %s260 = sadd.s32 %s258, %s259
          %s261 = smul.addr %s260, 4
          %s262 = scalar_lea.vmem %s0, %s261
          %s263 = smul.u32 2, %s24
        $region40: #{tpu_custom_call.1} parent=35 // pred_fallthru
          _
        // Predicated region
        $region41: #{tpu_custom_call.1} parent=35 // pred_check
          %p264 = pneg %p78
        $region42: #{tpu_custom_call.1} parent=35 // pred_check_branch
          %266 = sbr.rel (%p264) target = $region44
        $region43: #{tpu_custom_call.1} parent=35 // pred_region
          %s267 = smul.u32 2, %s24
          %p268 = scmp.lt.s32.totalorder %s23, 1
          %s269 = scalar_select %p268, %s23, 1
          %p270 = scmp.lt.s32.totalorder %s267, 1
          %s271 = scalar_select %p270, %s267, 1
          %s272 = smul.addr %s269, 2
          %s273 = sadd.s32 %s271, %s272
          %s274 = smul.addr %s273, 4
          %s275 = scalar_lea.vmem %s1, %s274
          %s276 = smul.u32 2, %s24
        $region44: #{tpu_custom_call.1} parent=35 // pred_fallthru
          _
      $region36: #{tpu_custom_call.1} parent=5 // pred_fallthru
        _
      %p277 = scmp.le.s32.totalorder 1, %s16
      %p278 = scmp.lt.s32.totalorder %s16, 3
      %p279 = pnand %p277, %p278
      %p280 = pneg %p279
      // Predicated region
      $region45: #{tpu_custom_call.1} parent=5 // pred_check
        _
      $region46: #{tpu_custom_call.1} parent=5 // pred_check_branch
        %282 = sbr.rel (%p279) target = $region48
      $region47: #{tpu_custom_call.1} parent=5 // pred_region
        %s283 = ssub.s32 %s16, 1
        %s284 = smul.u32 2, %s26
        %p285 = scmp.lt.s32.totalorder %s25, 1
        %s286 = scalar_select %p285, %s25, 1
        %p287 = scmp.lt.s32.totalorder %s284, 1
        %s288 = scalar_select %p287, %s284, 1
        %s289 = smul.addr %s286, 2
        %s290 = sadd.s32 %s288, %s289
        %s291 = smul.addr %s290, 4
        %s292 = scalar_lea.vmem %s0, %s291
        %p293 = pneg %p56
        %p294 = pneg %p53
        %s295 = smul.u32 2, %s26
        %p296 = scmp.lt.s32.totalorder %s25, 1
        %s297 = scalar_select %p296, %s25, 1
        %p298 = scmp.lt.s32.totalorder %s295, 1
        %s299 = scalar_select %p298, %s295, 1
        %s300 = smul.addr %s297, 2
        %s301 = sadd.s32 %s299, %s300
        %s302 = smul.addr %s301, 4
        %s303 = scalar_lea.vmem %s1, %s302
        %p304 = pneg %p84
        %p305 = pneg %p81
        %p306 = pneg %p105
        %p307 = pneg %p102
        %p308 = pneg %p126
        %p309 = pneg %p123
        %p310 = pneg %p147
        %p311 = pneg %p144
        %p312 = pneg %p168
        %p313 = pneg %p165
        %p314 = pneg %p189
        %p315 = pneg %p186
        %p316 = pneg %p217
        %p317 = pneg %p214
        %s318 = sand.u32 %s204, 1
        %s319 = scalar_lea.sflag [#allocation3], %s318
        %s320 = sand.u32 %s204, 1
        %s321 = smul.addr %s320, 8
        %s322 = scalar_lea.vmem [#allocation2], %s321
        %s323 = smul.u32 2, %s26
        %p324 = scmp.lt.s32.totalorder %s25, 1
        %s325 = scalar_select %p324, %s25, 1
        %p326 = scmp.lt.s32.totalorder %s323, 1
        %s327 = scalar_select %p326, %s323, 1
        %s328 = smul.addr %s325, 2
        %s329 = sadd.s32 %s327, %s328
        %s330 = smul.addr %s329, 4
        %s331 = scalar_lea.vmem %s0, %s330
        %s332 = smul.u32 2, %s26
        %s333 = smul.u32 2, %s26
        %p334 = scmp.lt.s32.totalorder %s25, 1
        %s335 = scalar_select %p334, %s25, 1
        %p336 = scmp.lt.s32.totalorder %s333, 1
        %s337 = scalar_select %p336, %s333, 1
        %s338 = smul.addr %s335, 2
        %s339 = sadd.s32 %s337, %s338
        %s340 = smul.addr %s339, 4
        %s341 = scalar_lea.vmem %s1, %s340
        %s342 = smul.u32 2, %s26
        %s343 = smul.u32 2, %s26
        %v344 = vld [vmem:[%s331] sm:$0xff]
        %v345 = vld [vmem:[%s341] sm:$0xff]
        %v346 = vld [vmem:[%s2] sm:$0xff]
        %v347 = vld [vmem:[%s2 + $0x8] sm:$0xff]
        %v348 = vld [vmem:[%s2 + $0x10] sm:$0xff]
        %v349 = vld [vmem:[%s4] sm:$0xff]
        %v350 = vld [vmem:[%s4 + $0x8] sm:$0xff]
        %v351 = vld [vmem:[%s4 + $0x10] sm:$0xff]
        %353 = vset.pattern.permute.xlu0 0
        %354 = vperm.xlu0 %353, %v349
        %v355 = vpop.permute.xlu0 %354
        %358 = vset.pattern.permute.xlu0 0
        %359 = vperm.xlu0 %358, %v350
        %v360 = vpop.permute.xlu0 %359
        %363 = vset.pattern.permute.xlu0 0
        %364 = vperm.xlu0 %363, %v351
        %v365 = vpop.permute.xlu0 %364
        %368 = vst [vmem:[#allocation1] ss:$2 sm:$0xff] %v344
        %v369 = vld.sshfl [vmem:[#allocation1] sm:$0xff pattern:$0x75316420]
        %v370 = vld.sshfl [vmem:[#allocation1 + $0x8] sm:$0xff pattern:$0x75316420]
        %vm371 = vcmask 31744
        %v373 = vsel %vm371, %v346, 0
        %v376 = vsel %vm371, %v347, 0
        %v379 = vsel %vm371, %v348, 0
        %vm381 = vcmask 1043456
        %v382 = vsel %vm381, %v369, 0
        %v384 = vsel %vm381, %v370, 0
        %386 = vmatpush.msra.mxu0 0.0
        %387 = vmatpush.msra.mxu0 0.0
        %388 = vmatpush.msra.mxu0 0.0
        %389 = vmatpush.msra.mxu0 0.0
        %390 = vmatpush.msra.mxu0 0.0
        %391 = vmatpush.msra.mxu0 0.0
        %392 = vmatpush.msra.mxu0 0.0
        %393 = vmatpush.msra.mxu0 0.0
        %394 = vmatpush.msra.mxu0 0.0
        %395 = vmatpush.msra.mxu0 0.0
        %396 = vmatpush.msra.mxu0 0.0
        %397 = vmatpush.msra.mxu0 0.0
        %398 = vmatpush.msra.mxu0 0.0
        %399 = vmatpush.msra.mxu0 0.0
        %400 = vmatpush.msra.mxu0 0.0
        %401 = vmatpush.msra.mxu0 %v382
        %402 = vmatmul.f32.gmra.mxu0 %v373
        %v403 = vpop.f32.mrf.mxu0
        %v404 = vadd.f32 %v355, %v403
        %405 = vmatmul.f32.gmra.mxu0 %v376
        %v406 = vpop.f32.mrf.mxu0
        %v407 = vadd.f32 %v360, %v406
        %408 = vmatmul.f32.gmra.mxu0 %v379
        %v409 = vpop.f32.mrf.mxu0
        %v410 = vadd.f32 %v365, %v409
        %411 = vdwg.mxu0
        %412 = vmatpush.msra.mxu0 0.0
        %413 = vmatpush.msra.mxu0 0.0
        %414 = vmatpush.msra.mxu0 0.0
        %415 = vmatpush.msra.mxu0 0.0
        %416 = vmatpush.msra.mxu0 0.0
        %417 = vmatpush.msra.mxu0 0.0
        %418 = vmatpush.msra.mxu0 0.0
        %419 = vmatpush.msra.mxu0 0.0
        %420 = vmatpush.msra.mxu0 0.0
        %421 = vmatpush.msra.mxu0 0.0
        %422 = vmatpush.msra.mxu0 0.0
        %423 = vmatpush.msra.mxu0 0.0
        %424 = vmatpush.msra.mxu0 0.0
        %425 = vmatpush.msra.mxu0 0.0
        %426 = vmatpush.msra.mxu0 0.0
        %427 = vmatpush.msra.mxu0 %v384
        %428 = vmatmul.f32.gmra.mxu0 %v373
        %v429 = vpop.f32.mrf.mxu0
        %v430 = vadd.f32 %v355, %v429
        %431 = vmatmul.f32.gmra.mxu0 %v376
        %v432 = vpop.f32.mrf.mxu0
        %v433 = vadd.f32 %v360, %v432
        %434 = vmatmul.f32.gmra.mxu0 %v379
        %v435 = vpop.f32.mrf.mxu0
        %v436 = vadd.f32 %v365, %v435
        %437 = vdwg.mxu0
        %v438 = vld [vmem:[%s3] sm:$0xff]
        %v439 = vld [vmem:[%s3 + $0x8] sm:$0xff]
        %v440 = vld [vmem:[%s3 + $0x10] sm:$0xff]
        %442 = vst [vmem:[#allocation1] ss:$2 sm:$0xff] %v345
        %v443 = vld.sshfl [vmem:[#allocation1] sm:$0xff pattern:$0x75316420]
        %v444 = vld.sshfl [vmem:[#allocation1 + $0x8] sm:$0xff pattern:$0x75316420]
        %v446 = vsel %vm371, %v438, 0
        %v449 = vsel %vm371, %v439, 0
        %v452 = vsel %vm371, %v440, 0
        %v454 = vsel %vm381, %v443, 0
        %v456 = vsel %vm381, %v444, 0
        %458 = vmatpush.msra.mxu0 0.0
        %459 = vmatpush.msra.mxu0 0.0
        %460 = vmatpush.msra.mxu0 0.0
        %461 = vmatpush.msra.mxu0 0.0
        %462 = vmatpush.msra.mxu0 0.0
        %463 = vmatpush.msra.mxu0 0.0
        %464 = vmatpush.msra.mxu0 0.0
        %465 = vmatpush.msra.mxu0 0.0
        %466 = vmatpush.msra.mxu0 0.0
        %467 = vmatpush.msra.mxu0 0.0
        %468 = vmatpush.msra.mxu0 0.0
        %469 = vmatpush.msra.mxu0 0.0
        %470 = vmatpush.msra.mxu0 0.0
        %471 = vmatpush.msra.mxu0 0.0
        %472 = vmatpush.msra.mxu0 0.0
        %473 = vmatpush.msra.mxu0 %v454
        %474 = vmatmul.f32.gmra.mxu0 %v446
        %v475 = vpop.f32.mrf.mxu0
        %v476 = vadd.f32 0.0, %v475
        %477 = vmatmul.f32.gmra.mxu0 %v449
        %v478 = vpop.f32.mrf.mxu0
        %v479 = vadd.f32 0.0, %v478
        %480 = vmatmul.f32.gmra.mxu0 %v452
        %v481 = vpop.f32.mrf.mxu0
        %v482 = vadd.f32 0.0, %v481
        %483 = vdwg.mxu0
        %484 = vmatpush.msra.mxu0 0.0
        %485 = vmatpush.msra.mxu0 0.0
        %486 = vmatpush.msra.mxu0 0.0
        %487 = vmatpush.msra.mxu0 0.0
        %488 = vmatpush.msra.mxu0 0.0
        %489 = vmatpush.msra.mxu0 0.0
        %490 = vmatpush.msra.mxu0 0.0
        %491 = vmatpush.msra.mxu0 0.0
        %492 = vmatpush.msra.mxu0 0.0
        %493 = vmatpush.msra.mxu0 0.0
        %494 = vmatpush.msra.mxu0 0.0
        %495 = vmatpush.msra.mxu0 0.0
        %496 = vmatpush.msra.mxu0 0.0
        %497 = vmatpush.msra.mxu0 0.0
        %498 = vmatpush.msra.mxu0 0.0
        %499 = vmatpush.msra.mxu0 %v456
        %500 = vmatmul.f32.gmra.mxu0 %v446
        %v501 = vpop.f32.mrf.mxu0
        %v502 = vadd.f32 0.0, %v501
        %503 = vmatmul.f32.gmra.mxu0 %v449
        %v504 = vpop.f32.mrf.mxu0
        %v505 = vadd.f32 0.0, %v504
        %506 = vmatmul.f32.gmra.mxu0 %v452
        %v507 = vpop.f32.mrf.mxu0
        %v508 = vadd.f32 0.0, %v507
        %509 = vdwg.mxu0
        %v510 = vadd.f32 %v404, %v476
        %v511 = vadd.f32 %v430, %v502
        %v512 = vadd.f32 %v407, %v479
        %v513 = vadd.f32 %v433, %v505
        %v514 = vxor.u32 %v510, 2147483648
        %v515 = vxor.u32 %v511, 2147483648
        %v516 = vxor.u32 %v512, 2147483648
        %v517 = vxor.u32 %v513, 2147483648
        %v518 = vmul.f32 %v514, 1.442695
        %v519 = vpow.pop %v518
        %v520 = vmul.f32 %v515, 1.442695
        %v521 = vpow.pop %v520
        %v522 = vmul.f32 %v516, 1.442695
        %v523 = vpow.pop %v522
        %v524 = vmul.f32 %v517, 1.442695
        %v525 = vpow.pop %v524
        %v526 = vadd.f32 %v519, 1.0
        %v527 = vadd.f32 %v521, 1.0
        %v528 = vadd.f32 %v523, 1.0
        %v529 = vadd.f32 %v525, 1.0
        %v530 = vrcp.pop %v526
        %v531 = vmul.f32 %v526, %v530
        %v532 = vsub.f32 1.0, %v531
        %v533 = vmul.f32 %v530, %v532
        %v534 = vadd.f32 %v530, %v533
        %vm535 = vweird.f32 %v526
        %vm536 = vweird.f32 %v530
        %vm537 = vmor %vm535, %vm536
        %v538 = vsel %vm537, %v530, %v534
        %v539 = vand.u32 2147483647, %v526
        %vm540 = vcmp.eq.f32.partialorder %v539, 8.507059e+37
        %v541 = vand.u32 %v526, 2147483648
        %v542 = vor.u32 1.1754944e-38, %v541
        %v543 = vsel %vm540, %v542, %v538
        %v544 = vmul.f32 1.0, %v543
        %v545 = vrcp.pop %v527
        %v546 = vmul.f32 %v527, %v545
        %v547 = vsub.f32 1.0, %v546
        %v548 = vmul.f32 %v545, %v547
        %v549 = vadd.f32 %v545, %v548
        %vm550 = vweird.f32 %v527
        %vm551 = vweird.f32 %v545
        %vm552 = vmor %vm550, %vm551
        %v553 = vsel %vm552, %v545, %v549
        %v554 = vand.u32 2147483647, %v527
        %vm555 = vcmp.eq.f32.partialorder %v554, 8.507059e+37
        %v556 = vand.u32 %v527, 2147483648
        %v557 = vor.u32 1.1754944e-38, %v556
        %v558 = vsel %vm555, %v557, %v553
        %v559 = vmul.f32 1.0, %v558
        %v560 = vrcp.pop %v528
        %v561 = vmul.f32 %v528, %v560
        %v562 = vsub.f32 1.0, %v561
        %v563 = vmul.f32 %v560, %v562
        %v564 = vadd.f32 %v560, %v563
        %vm565 = vweird.f32 %v528
        %vm566 = vweird.f32 %v560
        %vm567 = vmor %vm565, %vm566
        %v568 = vsel %vm567, %v560, %v564
        %v569 = vand.u32 2147483647, %v528
        %vm570 = vcmp.eq.f32.partialorder %v569, 8.507059e+37
        %v571 = vand.u32 %v528, 2147483648
        %v572 = vor.u32 1.1754944e-38, %v571
        %v573 = vsel %vm570, %v572, %v568
        %v574 = vmul.f32 1.0, %v573
        %v575 = vrcp.pop %v529
        %v576 = vmul.f32 %v529, %v575
        %v577 = vsub.f32 1.0, %v576
        %v578 = vmul.f32 %v575, %v577
        %v579 = vadd.f32 %v575, %v578
        %vm580 = vweird.f32 %v529
        %vm581 = vweird.f32 %v575
        %vm582 = vmor %vm580, %vm581
        %v583 = vsel %vm582, %v575, %v579
        %v584 = vand.u32 2147483647, %v529
        %vm585 = vcmp.eq.f32.partialorder %v584, 8.507059e+37
        %v586 = vand.u32 %v529, 2147483648
        %v587 = vor.u32 1.1754944e-38, %v586
        %v588 = vsel %vm585, %v587, %v583
        %v589 = vmul.f32 1.0, %v588
        %v592 = vrot.slane %v559, 4
        %v593 = vsel %vm381, %v544, %v592
        %v595 = vmul.f32 %v345, %v593
        %v596 = vld [vmem:[%s5] sm:$0xf]
        %598 = vst [vmem:[#allocation1] ss:$2 sm:$0xff] %v595
        %v599 = vld.sshfl [vmem:[#allocation1] sm:$0xff pattern:$0x75316420]
        %v600 = vld.sshfl [vmem:[#allocation1 + $0x8] sm:$0xff pattern:$0x75316420]
        %v602 = vsel %vm371, %v596, 0
        %v604 = vsel %vm381, %v599, 0
        %v606 = vsel %vm381, %v600, 0
        %608 = vmatpush.msra.mxu0 0.0
        %609 = vmatpush.msra.mxu0 0.0
        %610 = vmatpush.msra.mxu0 0.0
        %611 = vmatpush.msra.mxu0 0.0
        %612 = vmatpush.msra.mxu0 0.0
        %613 = vmatpush.msra.mxu0 0.0
        %614 = vmatpush.msra.mxu0 0.0
        %615 = vmatpush.msra.mxu0 0.0
        %616 = vmatpush.msra.mxu0 0.0
        %617 = vmatpush.msra.mxu0 0.0
        %618 = vmatpush.msra.mxu0 0.0
        %619 = vmatpush.msra.mxu0 0.0
        %620 = vmatpush.msra.mxu0 0.0
        %621 = vmatpush.msra.mxu0 0.0
        %622 = vmatpush.msra.mxu0 0.0
        %623 = vmatpush.msra.mxu0 %v604
        %624 = vmatmul.f32.gmra.mxu0 %v602
        %v625 = vpop.f32.mrf.mxu0
        %v626 = vadd.f32 0.0, %v625
        %627 = vdwg.mxu0
        %628 = vmatpush.msra.mxu0 0.0
        %629 = vmatpush.msra.mxu0 0.0
        %630 = vmatpush.msra.mxu0 0.0
        %631 = vmatpush.msra.mxu0 0.0
        %632 = vmatpush.msra.mxu0 0.0
        %633 = vmatpush.msra.mxu0 0.0
        %634 = vmatpush.msra.mxu0 0.0
        %635 = vmatpush.msra.mxu0 0.0
        %636 = vmatpush.msra.mxu0 0.0
        %637 = vmatpush.msra.mxu0 0.0
        %638 = vmatpush.msra.mxu0 0.0
        %639 = vmatpush.msra.mxu0 0.0
        %640 = vmatpush.msra.mxu0 0.0
        %641 = vmatpush.msra.mxu0 0.0
        %642 = vmatpush.msra.mxu0 0.0
        %643 = vmatpush.msra.mxu0 %v606
        %644 = vmatmul.f32.gmra.mxu0 %v602
        %v645 = vpop.f32.mrf.mxu0
        %v646 = vadd.f32 0.0, %v645
        %647 = vdwg.mxu0
        %v648 = vadd.f32 %v410, %v626
        %v649 = vadd.f32 %v436, %v646
        %v650 = vtanh.pop %v648
        %v651 = vtanh.pop %v649
        %v652 = vld [vmem:[%s6] sm:$0xf]
        %654 = vset.pattern.permute.xlu0 0
        %655 = vperm.xlu0 %654, %v652
        %v656 = vpop.permute.xlu0 %655
        %v658 = vadd.f32 %v482, %v656
        %v659 = vadd.f32 %v508, %v656
        %v660 = vsub.f32 %v650, %v658
        %v661 = vsub.f32 %v651, %v659
        %v662 = vmul.f32 %v574, %v660
        %v663 = vmul.f32 %v589, %v661
        %v664 = vadd.f32 %v658, %v662
        %v665 = vadd.f32 %v659, %v663
        %v668 = vrot.slane %v665, 4
        %v669 = vsel %vm381, %v664, %v668
        %671 = vst [vmem:[%s322] sm:$0xff] %v669
        %s672 = sand.u32 %s204, 1
        %s673 = scalar_lea.sflag [#allocation3], %s672
        %s674 = sand.u32 %s204, 1
        %s675 = smul.addr %s674, 8
        %s676 = scalar_lea.vmem [#allocation2], %s675
        // Predicated region
        $region49: #{tpu_custom_call.1} parent=47 // pred_check
          %p677 = pneg %p214
        $region50: #{tpu_custom_call.1} parent=47 // pred_check_branch
          %679 = sbr.rel (%p677) target = $region52
        $region51: #{tpu_custom_call.1} parent=47 // pred_region
          %s680 = smul.u32 2, %s26
          %682 = vsyncadd %s673, 0
          %s683 = smul.addr %s25, 2
          %s684 = sadd.s32 %s680, %s683
          %s685 = smul.addr %s684, 4
          %s686 = scalar_lea.hbm %s7, %s685
          %s688 = sshll.u32 %s676, 4
          %s689 = int_to_ptr.vmem [resolvable:$true] %s688
          %s690 = sshll.u32 %s686, 4
          %s691 = int_to_ptr.hbm [resolvable:$true] %s690
          %693 = dma.vmem_to_hbm [thread:$0]  %s689, 128, %s691, %s673
        $region52: #{tpu_custom_call.1} parent=47 // pred_fallthru
          _
      $region48: #{tpu_custom_call.1} parent=5 // pred_fallthru
        _
      %p694 = scmp.le.s32.totalorder 2, %s16
      // Predicated region
      $region53: #{tpu_custom_call.1} parent=5 // pred_check
        %p695 = pneg %p694
      $region54: #{tpu_custom_call.1} parent=5 // pred_check_branch
        %697 = sbr.rel (%p695) target = $region56
      $region55: #{tpu_custom_call.1} parent=5 // pred_region
        %s698 = ssub.s32 %s16, 2
        // Predicated region
        $region57: #{tpu_custom_call.1} parent=55 // pred_check
          %p699 = pneg %p220
        $region58: #{tpu_custom_call.1} parent=55 // pred_check_branch
          %701 = sbr.rel (%p699) target = $region60
        $region59: #{tpu_custom_call.1} parent=55 // pred_region
          %s702 = sand.u32 %s205, 1
          %s703 = scalar_lea.sflag [#allocation3], %s702
          %s704 = sand.u32 %s205, 1
          %s705 = smul.addr %s704, 8
          %s706 = scalar_lea.vmem [#allocation2], %s705
          %708 = dma.done %s703, 128
        $region60: #{tpu_custom_call.1} parent=55 // pred_fallthru
          _
      $region56: #{tpu_custom_call.1} parent=5 // pred_fallthru
        _
    $region6: #{tpu_custom_call.1} parent=1 // loop_footer
      %s20 = sadd.s32 1, %s16
    $region7: #{tpu_custom_call.1} parent=1 // loop_footer_branch
      %15 = sbr.rel target = $region3
    $region8: #{tpu_custom_call.1} parent=1 // loop_exit
      _
    %709 = vsyncpa [#allocation3], 1
    %s710 = scalar_lea.sflag [#allocation3], 1
    %711 = vsyncpa %s710, 1

</llo_original>
